<compile_context>
chip_gen: v7x
topology: tpu7x:2x2x1
jax: 0.10.0
libtpu: 0.0.40
codegen_flags: <defaults>
</compile_context>

<pallas_src>
import functools
import math

import jax
import jax.numpy as jnp
from jax.experimental import pallas as pl
from jax.experimental.pallas import tpu as pltpu


# ---------------------------------------------------------------------------
# Kernels
# ---------------------------------------------------------------------------
def gcn_fused_kernel(a_ref, x_ref, w1_ref, b1_ref, w2_ref, b2_ref, o_ref):
    """Both GCN layers in one invocation; H lives only in VMEM/vregs."""
    # Layer 1: H = relu(A @ (X W1) + b1)
    xw = jnp.dot(x_ref[...], w1_ref[...], preferred_element_type=jnp.float32)
    h = jnp.dot(a_ref[...], xw.astype(a_ref.dtype),
                preferred_element_type=jnp.float32)
    h = jnp.maximum(h + b1_ref[...], 0.0)
    # Layer 2: OUT = A @ (H W2) + b2
    hw = jnp.dot(h.astype(w2_ref.dtype), w2_ref[...],
                 preferred_element_type=jnp.float32)
    out = jnp.dot(a_ref[...], hw.astype(a_ref.dtype),
                  preferred_element_type=jnp.float32)
    o_ref[...] = (out + b2_ref[...]).astype(o_ref.dtype)


def feature_transform_kernel(x_ref, w_ref, o_ref):
    """Row tile of X @ W (hoisted out of the aggregation grid loop)."""
    o_ref[...] = jnp.dot(x_ref[...], w_ref[...],
                         preferred_element_type=jnp.float32).astype(o_ref.dtype)


def aggregate_kernel(a_ref, xw_ref, b_ref, o_ref, acc_ref, *, apply_relu):
    """k-tiled row aggregation: out_tile = A[row, :] @ XW + b (+ relu)."""
    k = pl.program_id(1)

    @pl.when(k == 0)
    def _():
        acc_ref[...] = jnp.zeros_like(acc_ref)

    acc_ref[...] += jnp.dot(a_ref[...], xw_ref[...],
                            preferred_element_type=jnp.float32)

    @pl.when(k == pl.num_programs(1) - 1)
    def _():
        r = acc_ref[...] + b_ref[...]
        if apply_relu:
            r = jnp.maximum(r, 0.0)
        o_ref[...] = r.astype(o_ref.dtype)


# ---------------------------------------------------------------------------
# Helpers
# ---------------------------------------------------------------------------
def _round_up(x, m):
    return ((x + m - 1) // m) * m


def _physical_vmem_bytes():
    try:
        return int(pltpu.get_tpu_info().vmem_capacity_bytes)
    except Exception:
        return 64 << 20  # conservative: v7x per-TensorCore VMEM


def _vmem_limit(buffer_bytes, cap):
    # Actual buffers + double-buffering/scratch headroom, capped below physical VMEM.
    want = max(int(2 * buffer_bytes), 16 << 20)
    return int(min(want, int(0.8 * cap)))


def _feature_transform(x, w, out_dtype, *, row_tile, cap):
    """XW = X @ W computed once (row-tiled over N); W stays VMEM resident."""
    n, f = x.shape
    hp = w.shape[1]
    nt = n // row_tile
    step_bytes = (row_tile * f * x.dtype.itemsize + f * hp * w.dtype.itemsize
                  + row_tile * hp * jnp.dtype(out_dtype).itemsize)
    return pl.pallas_call(
        feature_transform_kernel,
        out_shape=jax.ShapeDtypeStruct((n, hp), out_dtype),
        grid=(nt,),
        in_specs=[
            pl.BlockSpec((row_tile, f), lambda i: (i, 0)),   # X row tile (streamed)
            pl.BlockSpec((f, hp), lambda i: (0, 0)),         # W (resident)
        ],
        out_specs=pl.BlockSpec((row_tile, hp), lambda i: (i, 0)),
        compiler_params=pltpu.CompilerParams(
            dimension_semantics=("parallel",),
            vmem_limit_bytes=_vmem_limit(step_bytes, cap),
        ),
        cost_estimate=pl.CostEstimate(
            flops=int(2 * n * f * hp),
            transcendentals=0,
            bytes_accessed=int(x.size * x.dtype.itemsize
                               + w.size * w.dtype.itemsize
                               + n * hp * jnp.dtype(out_dtype).itemsize),
        ),
    )(x, w)


def _aggregate(a, xw, b, out_dtype, *, tm, tk, apply_relu, cap):
    """OUT = A @ XW + b (+relu), row-tiled x k-tiled with an f32 accumulator."""
    n_r, n_k = a.shape
    w_out = xw.shape[1]
    nt, nk = n_r // tm, n_k // tk
    step_bytes = (2 * tm * tk * a.dtype.itemsize          # A tile, double buffered
                  + 2 * tk * w_out * xw.dtype.itemsize    # XW tile, double buffered
                  + tm * w_out * 4                        # f32 accumulator
                  + tm * w_out * jnp.dtype(out_dtype).itemsize
                  + w_out * 4)
    kernel = functools.partial(aggregate_kernel, apply_relu=apply_relu)
    return pl.pallas_call(
        kernel,
        out_shape=jax.ShapeDtypeStruct((n_r, w_out), out_dtype),
        grid=(nt, nk),
        in_specs=[
            pl.BlockSpec((tm, tk), lambda i, k: (i, k)),     # A tile (streamed)
            pl.BlockSpec((tk, w_out), lambda i, k: (k, 0)),  # XW k-tile
            pl.BlockSpec((1, w_out), lambda i, k: (0, 0)),   # bias (resident)
        ],
        out_specs=pl.BlockSpec((tm, w_out), lambda i, k: (i, 0)),
        scratch_shapes=[pltpu.VMEM((tm, w_out), jnp.float32)],
        compiler_params=pltpu.CompilerParams(
            dimension_semantics=("parallel", "arbitrary"),
            vmem_limit_bytes=_vmem_limit(step_bytes, cap),
        ),
        cost_estimate=pl.CostEstimate(
            flops=int(2 * n_r * n_k * w_out),
            transcendentals=0,
            bytes_accessed=int(a.size * a.dtype.itemsize
                               + nt * xw.size * xw.dtype.itemsize
                               + n_r * w_out * jnp.dtype(out_dtype).itemsize),
        ),
    )(a, xw, b)


# ---------------------------------------------------------------------------
# Forward pass
# ---------------------------------------------------------------------------
def gcn_forward(a_norm, x, w1, b1, w2, b2, *, row_tile=256, k_tile=512,
                compute_dtype=jnp.float32, force_tiled=False):
    n = a_norm.shape[0]
    f = x.shape[1]
    hd = w1.shape[1]
    c = w2.shape[1]

    # Lane-dense padding of the narrow feature dims (exact: padded A cols are zero,
    # padded W2 rows only ever multiply padded H columns/rows).
    hp = _round_up(hd, 128)
    cp = _round_up(c, 128)

    cd = jnp.dtype(compute_dtype)
    cap = _physical_vmem_bytes()

    a_c = a_norm.astype(cd)
    x_c = x.astype(cd)
    w1p = jnp.pad(w1, ((0, 0), (0, hp - hd))).astype(cd)
    b1p = jnp.pad(b1, ((0, 0), (0, hp - hd))).astype(jnp.float32)
    w2p = jnp.pad(w2, ((0, hp - hd), (0, cp - c))).astype(cd)
    b2p = jnp.pad(b2, ((0, 0), (0, cp - c))).astype(jnp.float32)

    # ----------------- Fused single-kernel path (small/medium graphs) -------
    fused_buffer_bytes = (n * n * cd.itemsize                   # A
                          + n * f * cd.itemsize                 # X
                          + (f * hp + hp * cp) * cd.itemsize    # W1, W2
                          + (hp + cp) * 4                       # biases
                          + 2 * n * hp * 4 + n * cp * 4)        # XW/H/out intermediates
    if (not force_tiled) and fused_buffer_bytes <= int(0.35 * cap):
        hbm_bytes = (a_c.size * cd.itemsize + x_c.size * cd.itemsize
                     + (w1p.size + w2p.size) * cd.itemsize
                     + (b1p.size + b2p.size) * 4 + n * cp * 4)
        out_padded = pl.pallas_call(
            gcn_fused_kernel,
            out_shape=jax.ShapeDtypeStruct((n, cp), jnp.float32),
            compiler_params=pltpu.CompilerParams(
                vmem_limit_bytes=_vmem_limit(fused_buffer_bytes, cap)),
            cost_estimate=pl.CostEstimate(
                flops=int(2 * n * f * hp + 2 * n * n * hp
                          + 2 * n * hp * cp + 2 * n * n * cp),
                transcendentals=0,
                bytes_accessed=int(hbm_bytes),
            ),
        )(a_c, x_c, w1p, b1p, w2p, b2p)
        return out_padded[:, :c]

    # ----------------- Tiled path: hoisted transforms + k-tiled aggregation -
    tm = max(128, _round_up(min(row_tile, n), 128))
    tk = max(128, _round_up(min(k_tile, n), 128))
    n_pad = _round_up(n, math.lcm(tm, tk))

    a_p = jnp.pad(a_c, ((0, n_pad - n), (0, n_pad - n)))
    x_p = jnp.pad(x_c, ((0, n_pad - n), (0, 0)))

    # Layer 1: H = relu(A @ (X W1) + b1)   (X@W1 computed exactly once)
    xw1 = _feature_transform(x_p, w1p, cd, row_tile=tm, cap=cap)
    h = _aggregate(a_p, xw1, b1p, cd, tm=tm, tk=tk, apply_relu=True, cap=cap)

    # Layer 2: OUT = A @ (H W2) + b2       (H@W2 computed exactly once)
    hw2 = _feature_transform(h, w2p, cd, row_tile=tm, cap=cap)
    out = _aggregate(a_p, hw2, b2p, jnp.float32, tm=tm, tk=tk,
                     apply_relu=False, cap=cap)
    return out[:n, :c]


# ---------------------------------------------------------------------------
# Host-side graph / parameter construction and reference
# ---------------------------------------------------------------------------
def build_normalized_adjacency(key, num_nodes, edge_prob=0.1):
    """Random undirected graph + self loops, symmetric 'both' normalization."""
    upper = jax.random.bernoulli(
        key, p=edge_prob, shape=(num_nodes, num_nodes)).astype(jnp.float32)
    upper = jnp.triu(upper, k=1)
    adj = upper + upper.T
    adj = adj + jnp.eye(num_nodes, dtype=jnp.float32)  # dgl.add_self_loop
    deg = jnp.sum(adj, axis=1)
    d_inv_sqrt = 1.0 / jnp.sqrt(deg)
    return adj * d_inv_sqrt[:, None] * d_inv_sqrt[None, :]


def reference_gcn(a_norm, x, w1, b1, w2, b2):
    h = jnp.maximum(a_norm @ (x @ w1) + b1, 0.0)
    return a_norm @ (h @ w2) + b2


if __name__ == "__main__":
    num_nodes = 256     # graph nodes (embedding rows)
    in_feats = 64       # dem
    hidden_size = 32
    num_classes = 8

    key = jax.random.PRNGKey(0)
    k_adj, k_emb, k_w1, k_w2 = jax.random.split(key, 4)

    a_norm = build_normalized_adjacency(k_adj, num_nodes)
    # nn.Embedding weight ~ N(0, 1); GraphConv weights: Glorot-like uniform.
    x = jax.random.normal(k_emb, (num_nodes, in_feats), dtype=jnp.float32)

    def glorot(k, fan_in, fan_out):
        limit = jnp.sqrt(6.0 / (fan_in + fan_out))
        return jax.random.uniform(k, (fan_in, fan_out), minval=-limit,
                                  maxval=limit, dtype=jnp.float32)

    w1 = glorot(k_w1, in_feats, hidden_size)
    b1 = jnp.zeros((1, hidden_size), dtype=jnp.float32)
    w2 = glorot(k_w2, hidden_size, num_classes)
    b2 = jnp.zeros((1, num_classes), dtype=jnp.float32)

    ref = reference_gcn(a_norm, x, w1, b1, w2, b2)

    # 1) Fused single-kernel path (the default for VMEM-resident graphs).
    out_fused = jax.block_until_ready(gcn_forward(a_norm, x, w1, b1, w2, b2))
    assert out_fused.shape == (num_nodes, num_classes)
    assert jnp.allclose(out_fused, ref, atol=1e-4, rtol=1e-4)

    # 2) Scalable tiled path (hoisted transforms + k-tiled aggregation), f32 A.
    out_tiled = jax.block_until_ready(
        gcn_forward(a_norm, x, w1, b1, w2, b2, row_tile=128, k_tile=128,
                    force_tiled=True))
    assert jnp.allclose(out_tiled, ref, atol=1e-4, rtol=1e-4)

    # 3) Tiled path with bf16-streamed A/X/W (f32 MXU accumulation).
    out_bf16 = jax.block_until_ready(
        gcn_forward(a_norm, x, w1, b1, w2, b2, row_tile=128, k_tile=128,
                    force_tiled=True, compute_dtype=jnp.bfloat16))
    assert jnp.allclose(out_bf16, ref, atol=5e-2, rtol=5e-2)

    print("KERNEL_OK")
</pallas_src>

<mosaic_0001>
module attributes {stable_mosaic.version = 11 : i64} {
  func.func @gcn_fused_kernel(%arg0: memref<256x256xf32, #tpu.memory_space<vmem>>, %arg1: memref<256x64xf32, #tpu.memory_space<vmem>>, %arg2: memref<64x128xf32, #tpu.memory_space<vmem>>, %arg3: memref<1x128xf32, #tpu.memory_space<vmem>>, %arg4: memref<128x128xf32, #tpu.memory_space<vmem>>, %arg5: memref<1x128xf32, #tpu.memory_space<vmem>>, %arg6: memref<256x128xf32, #tpu.memory_space<vmem>>) attributes {dimension_semantics = [], scalar_prefetch = 0 : i64, scratch_operands = 0 : i64, tpu.core_type = #tpu.core_type<tc>} {
    %c0 = arith.constant 0 : index
    %c0_0 = arith.constant 0 : index
    %0 = vector.load %arg1[%c0, %c0_0] : memref<256x64xf32, #tpu.memory_space<vmem>>, vector<256x64xf32>
    %c0_1 = arith.constant 0 : index
    %c0_2 = arith.constant 0 : index
    %1 = vector.load %arg2[%c0_1, %c0_2] : memref<64x128xf32, #tpu.memory_space<vmem>>, vector<64x128xf32>
    %cst = arith.constant dense<0.000000e+00> : vector<256x128xf32>
    %2 = tpu.matmul %0, %1, %cst {dimension_numbers = #tpu.dot_dimension_numbers<[1], [0], [0], [1], [0, 0, 1, 1], [], []>} : vector<256x64xf32>, vector<64x128xf32>, vector<256x128xf32> -> vector<256x128xf32>
    %c0_3 = arith.constant 0 : index
    %c0_4 = arith.constant 0 : index
    %3 = vector.load %arg0[%c0_3, %c0_4] : memref<256x256xf32, #tpu.memory_space<vmem>>, vector<256x256xf32>
    %cst_5 = arith.constant dense<0.000000e+00> : vector<256x128xf32>
    %4 = tpu.matmul %3, %2, %cst_5 {dimension_numbers = #tpu.dot_dimension_numbers<[1], [0], [0], [1], [0, 0, 1, 1], [], []>} : vector<256x256xf32>, vector<256x128xf32>, vector<256x128xf32> -> vector<256x128xf32>
    %c0_6 = arith.constant 0 : index
    %c0_7 = arith.constant 0 : index
    %5 = vector.load %arg3[%c0_6, %c0_7] : memref<1x128xf32, #tpu.memory_space<vmem>>, vector<1x128xf32>
    %6 = vector.broadcast %5 : vector<1x128xf32> to vector<256x128xf32>
    %7 = arith.addf %4, %6 : vector<256x128xf32>
    %cst_8 = arith.constant 0.000000e+00 : f32
    %8 = vector.broadcast %cst_8 : f32 to vector<256x128xf32>
    %9 = arith.maximumf %7, %8 : vector<256x128xf32>
    %c0_9 = arith.constant 0 : index
    %c0_10 = arith.constant 0 : index
    %10 = vector.load %arg4[%c0_9, %c0_10] : memref<128x128xf32, #tpu.memory_space<vmem>>, vector<128x128xf32>
    %cst_11 = arith.constant dense<0.000000e+00> : vector<256x128xf32>
    %11 = tpu.matmul %9, %10, %cst_11 {dimension_numbers = #tpu.dot_dimension_numbers<[1], [0], [0], [1], [0, 0, 1, 1], [], []>} : vector<256x128xf32>, vector<128x128xf32>, vector<256x128xf32> -> vector<256x128xf32>
    %c0_12 = arith.constant 0 : index
    %c0_13 = arith.constant 0 : index
    %12 = vector.load %arg0[%c0_12, %c0_13] : memref<256x256xf32, #tpu.memory_space<vmem>>, vector<256x256xf32>
    %cst_14 = arith.constant dense<0.000000e+00> : vector<256x128xf32>
    %13 = tpu.matmul %12, %11, %cst_14 {dimension_numbers = #tpu.dot_dimension_numbers<[1], [0], [0], [1], [0, 0, 1, 1], [], []>} : vector<256x256xf32>, vector<256x128xf32>, vector<256x128xf32> -> vector<256x128xf32>
    %c0_15 = arith.constant 0 : index
    %c0_16 = arith.constant 0 : index
    %14 = vector.load %arg5[%c0_15, %c0_16] : memref<1x128xf32, #tpu.memory_space<vmem>>, vector<1x128xf32>
    %15 = vector.broadcast %14 : vector<1x128xf32> to vector<256x128xf32>
    %16 = arith.addf %13, %15 : vector<256x128xf32>
    %c0_17 = arith.constant 0 : index
    %c0_18 = arith.constant 0 : index
    %17 = vector.load %arg6[%c0_17, %c0_18] : memref<256x128xf32, #tpu.memory_space<vmem>>, vector<256x128xf32>
    tpu.vector_store %arg6[%c0_17, %c0_18], %16 {strides = array<i32>} : memref<256x128xf32, #tpu.memory_space<vmem>>, vector<256x128xf32>,
    return
  }
}

</mosaic_0001>

<llo_original>
// kernel: tpu_custom_call.1
$region0: #{tpu_custom_call.1}
  #allocation0 [shape = 'u32[]', space=smem, size = 0x4, offset = 0x4, fixed_abs, tag = 'smem constant byte address 0x4 - core index']
  #allocation1 [shape = 'u32[144,128]{1,0:T(1,128)}', space=vmem, size = 0x12000, scoped, tag = 'internal scratch']
  %s0 = inlined_call_operand.hbm [shape: f32[256,256], index: 0, kind: input, shape index: {}]
  %s1 = inlined_call_operand.vmem [shape: f32[256,64], index: 1, kind: input, shape index: {}]
  %s2 = inlined_call_operand.vmem [shape: f32[64,128], index: 2, kind: input, shape index: {}]
  %s3 = inlined_call_operand.vmem [shape: f32[1,128], index: 3, kind: input, shape index: {}]
  %s4 = inlined_call_operand.vmem [shape: f32[128,128], index: 4, kind: input, shape index: {}]
  %s5 = inlined_call_operand.vmem [shape: f32[1,128], index: 5, kind: input, shape index: {}]
  %s6 = inlined_call_operand.hbm [shape: f32[256,128], index: 6, kind: output, shape index: {}]
  %s7 = sld [smem:[#allocation0]]
  $region38: #{tpu_custom_call.1} parent=0
    _
  %s9 = ssub.s32 1, %s7
  %s10 = scalar_select 0, %s9, %s7
  $region1: #{tpu_custom_call.1} parent=0
    #allocation2 [shape = 'u8[262144]{0}', space=vmem, size = 0x40000, scoped, tag = 'input window, operand 0, single buffered']
    #allocation3 [shape = 's32[1]{0}', space=sflag, size = 0x4, scoped, tag = 'scoped memory for tpu_custom_call.1']
    #allocation4 [shape = 's32[1]{0}', space=sflag, size = 0x4, scoped, tag = 'scoped memory for tpu_custom_call.1']
    #allocation5 [shape = 'u8[131072]{0}', space=vmem, size = 0x20000, scoped, tag = 'output window, operand 0, single buffered']
    %11 = vsyncpa [#allocation3], 0
    %12 = vsyncpa [#allocation4], 0
    // Predicated region
    $region2: #{tpu_custom_call.1} parent=1 // pred_check
      _
    $region3: #{tpu_custom_call.1} parent=1 // pred_check_branch
      %14 = sbr.rel (0) target = $region5
    $region4: #{tpu_custom_call.1} parent=1 // pred_region
      %s16 = ssub.s32 8192, 8192
      %17 = vsyncadd [#allocation3], %s16
      %s18 = sshll.u32 [#allocation2], 4
      %s19 = int_to_ptr.vmem [resolvable:$true] %s18
      %24 = dma.hbm_to_vmem [thread:$0]  %s0, 8192, %s19, [#allocation3], 256, 256, 16
    $region5: #{tpu_custom_call.1} parent=1 // pred_fallthru
      _
    // Predicated region
    $region6: #{tpu_custom_call.1} parent=1 // pred_check
      _
    $region7: #{tpu_custom_call.1} parent=1 // pred_check_branch
      %26 = sbr.rel (0) target = $region9
    $region8: #{tpu_custom_call.1} parent=1 // pred_region
      _
    $region9: #{tpu_custom_call.1} parent=1 // pred_fallthru
      _
    // Predicated region
    $region10: #{tpu_custom_call.1} parent=1 // pred_check
      _
    $region11: #{tpu_custom_call.1} parent=1 // pred_check_branch
      %28 = sbr.rel (0) target = $region13
    $region12: #{tpu_custom_call.1} parent=1 // pred_region
      _
    $region13: #{tpu_custom_call.1} parent=1 // pred_fallthru
      _
    // Predicated region
    $region14: #{tpu_custom_call.1} parent=1 // pred_check
      _
    $region15: #{tpu_custom_call.1} parent=1 // pred_check_branch
      %30 = sbr.rel (0) target = $region17
    $region16: #{tpu_custom_call.1} parent=1 // pred_region
      _
    $region17: #{tpu_custom_call.1} parent=1 // pred_fallthru
      _
    // Predicated region
    $region18: #{tpu_custom_call.1} parent=1 // pred_check
      _
    $region19: #{tpu_custom_call.1} parent=1 // pred_check_branch
      %32 = sbr.rel (0) target = $region21
    $region20: #{tpu_custom_call.1} parent=1 // pred_region
      _
    $region21: #{tpu_custom_call.1} parent=1 // pred_fallthru
      _
    // Predicated region
    $region22: #{tpu_custom_call.1} parent=1 // pred_check
      _
    $region23: #{tpu_custom_call.1} parent=1 // pred_check_branch
      %34 = sbr.rel (0) target = $region25
    $region24: #{tpu_custom_call.1} parent=1 // pred_region
      _
    $region25: #{tpu_custom_call.1} parent=1 // pred_fallthru
      _
    // Predicated region
    $region26: #{tpu_custom_call.1} parent=1 // pred_check
      _
    $region27: #{tpu_custom_call.1} parent=1 // pred_check_branch
      %36 = sbr.rel (0) target = $region29
    $region28: #{tpu_custom_call.1} parent=1 // pred_region
      %37 = dma.done [#allocation3], 8192
    $region29: #{tpu_custom_call.1} parent=1 // pred_fallthru
      _
    %v38 = vld [vmem:[%s1] sm:$0xff]
    %v39 = vld [vmem:[%s1 + $0x8] sm:$0xff]
    %v40 = vld [vmem:[%s1 + $0x10] sm:$0xff]
    %v41 = vld [vmem:[%s1 + $0x18] sm:$0xff]
    %v42 = vld [vmem:[%s1 + $0x20] sm:$0xff]
    %v43 = vld [vmem:[%s1 + $0x28] sm:$0xff]
    %v44 = vld [vmem:[%s1 + $0x30] sm:$0xff]
    %v45 = vld [vmem:[%s1 + $0x38] sm:$0xff]
    %v46 = vld [vmem:[%s1 + $0x40] sm:$0xff]
    %v47 = vld [vmem:[%s1 + $0x48] sm:$0xff]
    %v48 = vld [vmem:[%s1 + $0x50] sm:$0xff]
    %v49 = vld [vmem:[%s1 + $0x58] sm:$0xff]
    %v50 = vld [vmem:[%s1 + $0x60] sm:$0xff]
    %v51 = vld [vmem:[%s1 + $0x68] sm:$0xff]
    %v52 = vld [vmem:[%s1 + $0x70] sm:$0xff]
    %v53 = vld [vmem:[%s1 + $0x78] sm:$0xff]
    %v54 = vld [vmem:[%s1 + $0x80] sm:$0xff]
    %v55 = vld [vmem:[%s1 + $0x88] sm:$0xff]
    %v56 = vld [vmem:[%s1 + $0x90] sm:$0xff]
    %v57 = vld [vmem:[%s1 + $0x98] sm:$0xff]
    %v58 = vld [vmem:[%s1 + $0xa0] sm:$0xff]
    %v59 = vld [vmem:[%s1 + $0xa8] sm:$0xff]
    %v60 = vld [vmem:[%s1 + $0xb0] sm:$0xff]
    %v61 = vld [vmem:[%s1 + $0xb8] sm:$0xff]
    %v62 = vld [vmem:[%s1 + $0xc0] sm:$0xff]
    %v63 = vld [vmem:[%s1 + $0xc8] sm:$0xff]
    %v64 = vld [vmem:[%s1 + $0xd0] sm:$0xff]
    %v65 = vld [vmem:[%s1 + $0xd8] sm:$0xff]
    %v66 = vld [vmem:[%s1 + $0xe0] sm:$0xff]
    %v67 = vld [vmem:[%s1 + $0xe8] sm:$0xff]
    %v68 = vld [vmem:[%s1 + $0xf0] sm:$0xff]
    %v69 = vld [vmem:[%s1 + $0xf8] sm:$0xff]
    %v70 = vld [vmem:[%s2] sm:$0xff]
    %v71 = vld [vmem:[%s2 + $0x8] sm:$0xff]
    %v72 = vld [vmem:[%s2 + $0x10] sm:$0xff]
    %v73 = vld [vmem:[%s2 + $0x18] sm:$0xff]
    %v74 = vld [vmem:[%s2 + $0x20] sm:$0xff]
    %v75 = vld [vmem:[%s2 + $0x28] sm:$0xff]
    %v76 = vld [vmem:[%s2 + $0x30] sm:$0xff]
    %v77 = vld [vmem:[%s2 + $0x38] sm:$0xff]
    %vm78 = vcmask 523264
    %v80 = vsel %vm78, %v38, 0
    %v83 = vsel %vm78, %v39, 0
    %v86 = vsel %vm78, %v40, 0
    %v89 = vsel %vm78, %v41, 0
    %v92 = vsel %vm78, %v42, 0
    %v95 = vsel %vm78, %v43, 0
    %v98 = vsel %vm78, %v44, 0
    %v101 = vsel %vm78, %v45, 0
    %v104 = vsel %vm78, %v46, 0
    %v107 = vsel %vm78, %v47, 0
    %v110 = vsel %vm78, %v48, 0
    %v113 = vsel %vm78, %v49, 0
    %v116 = vsel %vm78, %v50, 0
    %v119 = vsel %vm78, %v51, 0
    %v122 = vsel %vm78, %v52, 0
    %v125 = vsel %vm78, %v53, 0
    %v128 = vsel %vm78, %v54, 0
    %v131 = vsel %vm78, %v55, 0
    %v134 = vsel %vm78, %v56, 0
    %v137 = vsel %vm78, %v57, 0
    %v140 = vsel %vm78, %v58, 0
    %v143 = vsel %vm78, %v59, 0
    %v146 = vsel %vm78, %v60, 0
    %v149 = vsel %vm78, %v61, 0
    %v152 = vsel %vm78, %v62, 0
    %v155 = vsel %vm78, %v63, 0
    %v158 = vsel %vm78, %v64, 0
    %v161 = vsel %vm78, %v65, 0
    %v164 = vsel %vm78, %v66, 0
    %v167 = vsel %vm78, %v67, 0
    %v170 = vsel %vm78, %v68, 0
    %v173 = vsel %vm78, %v69, 0
    %175 = vmatprep.subr.mxu0 0.0
    %176 = vmatpush1.msra.mxu0 %v70
    %177 = vmatprep.subr.mxu0 0.0
    %178 = vmatpush1.msra.mxu0 %v71
    %179 = vmatprep.subr.mxu0 0.0
    %180 = vmatpush1.msra.mxu0 %v72
    %181 = vmatprep.subr.mxu0 0.0
    %182 = vmatpush1.msra.mxu0 %v73
    %183 = vmatprep.subr.mxu0 0.0
    %184 = vmatpush1.msra.mxu0 %v74
    %185 = vmatprep.subr.mxu0 0.0
    %186 = vmatpush1.msra.mxu0 %v75
    %187 = vmatprep.subr.mxu0 0.0
    %188 = vmatpush1.msra.mxu0 %v76
    %189 = vmatprep.subr.mxu0 0.0
    %190 = vmatpush1.msra.mxu0 %v77
    %191 = vmatprep.subr.mxu0 0.0
    %192 = vmatpush1.msra.mxu0 0.0
    %193 = vmatprep.subr.mxu0 0.0
    %194 = vmatpush1.msra.mxu0 0.0
    %195 = vmatprep.subr.mxu0 0.0
    %196 = vmatpush1.msra.mxu0 0.0
    %197 = vmatprep.subr.mxu0 0.0
    %198 = vmatpush1.msra.mxu0 0.0
    %199 = vmatprep.subr.mxu0 0.0
    %200 = vmatpush1.msra.mxu0 0.0
    %201 = vmatprep.subr.mxu0 0.0
    %202 = vmatpush1.msra.mxu0 0.0
    %203 = vmatprep.subr.mxu0 0.0
    %204 = vmatpush1.msra.mxu0 0.0
    %205 = vmatprep.subr.mxu0 0.0
    %206 = vmatpush1.msra.mxu0 0.0
    %207 = vmatprep.subr.mxu0 0.0
    %208 = vmatpush1.msra.mxu0 0.0
    %209 = vmatprep.subr.mxu0 0.0
    %210 = vmatpush1.msra.mxu0 0.0
    %211 = vmatprep.subr.mxu0 0.0
    %212 = vmatpush1.msra.mxu0 0.0
    %213 = vmatprep.subr.mxu0 0.0
    %214 = vmatpush1.msra.mxu0 0.0
    %215 = vmatprep.subr.mxu0 0.0
    %216 = vmatpush1.msra.mxu0 0.0
    %217 = vmatprep.subr.mxu0 0.0
    %218 = vmatpush1.msra.mxu0 0.0
    %219 = vmatprep.subr.mxu0 0.0
    %220 = vmatpush1.msra.mxu0 0.0
    %221 = vmatprep.subr.mxu0 0.0
    %222 = vmatpush1.msra.mxu0 0.0
    %223 = vmatprep.subr.mxu0 0.0
    %224 = vmatpush1.msra.mxu0 0.0
    %225 = vmatprep.subr.mxu0 0.0
    %226 = vmatpush1.msra.mxu0 0.0
    %227 = vmatprep.subr.mxu0 0.0
    %228 = vmatpush1.msra.mxu0 0.0
    %229 = vmatprep.subr.mxu0 0.0
    %230 = vmatpush1.msra.mxu0 0.0
    %231 = vmatprep.subr.mxu0 0.0
    %232 = vmatpush1.msra.mxu0 0.0
    %233 = vmatprep.subr.mxu0 0.0
    %234 = vmatpush1.msra.mxu0 0.0
    %235 = vmatprep.subr.mxu0 0.0
    %236 = vmatpush1.msra.mxu0 0.0
    %237 = vmatprep.subr.mxu0 0.0
    %238 = vmatpush1.msra.mxu0 0.0
    %239 = vmatprep.mubr.f32.mxu0 0.0
    %240 = vmatmul.mubr.f32.gmra.mrb[0].mxu0 %v80
    %v241 = vpop.f32.mrb[0].mxu0
    %v242 = vadd.f32 0.0, %v241
    %v243 = vpop.f32.mrb[0].mxu0
    %244 = vmatprep.mubr.f32.mxu0 0.0
    %245 = vmatmul.mubr.f32.gmra.mrb[0].mxu0 %v83
    %v246 = vpop.f32.mrb[0].mxu0
    %v247 = vadd.f32 0.0, %v246
    %v248 = vpop.f32.mrb[0].mxu0
    %249 = vmatprep.mubr.f32.mxu0 0.0
    %250 = vmatmul.mubr.f32.gmra.mrb[0].mxu0 %v86
    %v251 = vpop.f32.mrb[0].mxu0
    %v252 = vadd.f32 0.0, %v251
    %v253 = vpop.f32.mrb[0].mxu0
    %254 = vmatprep.mubr.f32.mxu0 0.0
    %255 = vmatmul.mubr.f32.gmra.mrb[0].mxu0 %v89
    %v256 = vpop.f32.mrb[0].mxu0
    %v257 = vadd.f32 0.0, %v256
    %v258 = vpop.f32.mrb[0].mxu0
    %259 = vmatprep.mubr.f32.mxu0 0.0
    %260 = vmatmul.mubr.f32.gmra.mrb[0].mxu0 %v92
    %v261 = vpop.f32.mrb[0].mxu0
    %v262 = vadd.f32 0.0, %v261
    %v263 = vpop.f32.mrb[0].mxu0
    %264 = vmatprep.mubr.f32.mxu0 0.0
    %265 = vmatmul.mubr.f32.gmra.mrb[0].mxu0 %v95
    %v266 = vpop.f32.mrb[0].mxu0
    %v267 = vadd.f32 0.0, %v266
    %v268 = vpop.f32.mrb[0].mxu0
    %269 = vmatprep.mubr.f32.mxu0 0.0
    %270 = vmatmul.mubr.f32.gmra.mrb[0].mxu0 %v98
    %v271 = vpop.f32.mrb[0].mxu0
    %v272 = vadd.f32 0.0, %v271
    %v273 = vpop.f32.mrb[0].mxu0
    %274 = vmatprep.mubr.f32.mxu0 0.0
    %275 = vmatmul.mubr.f32.gmra.mrb[0].mxu0 %v101
    %v276 = vpop.f32.mrb[0].mxu0
    %v277 = vadd.f32 0.0, %v276
    %v278 = vpop.f32.mrb[0].mxu0
    %279 = vmatprep.mubr.f32.mxu0 0.0
    %280 = vmatmul.mubr.f32.gmra.mrb[0].mxu0 %v104
    %v281 = vpop.f32.mrb[0].mxu0
    %v282 = vadd.f32 0.0, %v281
    %v283 = vpop.f32.mrb[0].mxu0
    %284 = vmatprep.mubr.f32.mxu0 0.0
    %285 = vmatmul.mubr.f32.gmra.mrb[0].mxu0 %v107
    %v286 = vpop.f32.mrb[0].mxu0
    %v287 = vadd.f32 0.0, %v286
    %v288 = vpop.f32.mrb[0].mxu0
    %289 = vmatprep.mubr.f32.mxu0 0.0
    %290 = vmatmul.mubr.f32.gmra.mrb[0].mxu0 %v110
    %v291 = vpop.f32.mrb[0].mxu0
    %v292 = vadd.f32 0.0, %v291
    %v293 = vpop.f32.mrb[0].mxu0
    %294 = vmatprep.mubr.f32.mxu0 0.0
    %295 = vmatmul.mubr.f32.gmra.mrb[0].mxu0 %v113
    %v296 = vpop.f32.mrb[0].mxu0
    %v297 = vadd.f32 0.0, %v296
    %v298 = vpop.f32.mrb[0].mxu0
    %299 = vmatprep.mubr.f32.mxu0 0.0
    %300 = vmatmul.mubr.f32.gmra.mrb[0].mxu0 %v116
    %v301 = vpop.f32.mrb[0].mxu0
    %v302 = vadd.f32 0.0, %v301
    %v303 = vpop.f32.mrb[0].mxu0
    %304 = vmatprep.mubr.f32.mxu0 0.0
    %305 = vmatmul.mubr.f32.gmra.mrb[0].mxu0 %v119
    %v306 = vpop.f32.mrb[0].mxu0
    %v307 = vadd.f32 0.0, %v306
    %v308 = vpop.f32.mrb[0].mxu0
    %309 = vmatprep.mubr.f32.mxu0 0.0
    %310 = vmatmul.mubr.f32.gmra.mrb[0].mxu0 %v122
    %v311 = vpop.f32.mrb[0].mxu0
    %v312 = vadd.f32 0.0, %v311
    %v313 = vpop.f32.mrb[0].mxu0
    %314 = vmatprep.mubr.f32.mxu0 0.0
    %315 = vmatmul.mubr.f32.gmra.mrb[0].mxu0 %v125
    %v316 = vpop.f32.mrb[0].mxu0
    %v317 = vadd.f32 0.0, %v316
    %v318 = vpop.f32.mrb[0].mxu0
    %319 = vmatprep.mubr.f32.mxu0 0.0
    %320 = vmatmul.mubr.f32.gmra.mrb[0].mxu0 %v128
    %v321 = vpop.f32.mrb[0].mxu0
    %v322 = vadd.f32 0.0, %v321
    %v323 = vpop.f32.mrb[0].mxu0
    %324 = vmatprep.mubr.f32.mxu0 0.0
    %325 = vmatmul.mubr.f32.gmra.mrb[0].mxu0 %v131
    %v326 = vpop.f32.mrb[0].mxu0
    %v327 = vadd.f32 0.0, %v326
    %v328 = vpop.f32.mrb[0].mxu0
    %329 = vmatprep.mubr.f32.mxu0 0.0
    %330 = vmatmul.mubr.f32.gmra.mrb[0].mxu0 %v134
    %v331 = vpop.f32.mrb[0].mxu0
    %v332 = vadd.f32 0.0, %v331
    %v333 = vpop.f32.mrb[0].mxu0
    %334 = vmatprep.mubr.f32.mxu0 0.0
    %335 = vmatmul.mubr.f32.gmra.mrb[0].mxu0 %v137
    %v336 = vpop.f32.mrb[0].mxu0
    %v337 = vadd.f32 0.0, %v336
    %v338 = vpop.f32.mrb[0].mxu0
    %339 = vmatprep.mubr.f32.mxu0 0.0
    %340 = vmatmul.mubr.f32.gmra.mrb[0].mxu0 %v140
    %v341 = vpop.f32.mrb[0].mxu0
    %v342 = vadd.f32 0.0, %v341
    %v343 = vpop.f32.mrb[0].mxu0
    %344 = vmatprep.mubr.f32.mxu0 0.0
    %345 = vmatmul.mubr.f32.gmra.mrb[0].mxu0 %v143
    %v346 = vpop.f32.mrb[0].mxu0
    %v347 = vadd.f32 0.0, %v346
    %v348 = vpop.f32.mrb[0].mxu0
    %349 = vmatprep.mubr.f32.mxu0 0.0
    %350 = vmatmul.mubr.f32.gmra.mrb[0].mxu0 %v146
    %v351 = vpop.f32.mrb[0].mxu0
    %v352 = vadd.f32 0.0, %v351
    %v353 = vpop.f32.mrb[0].mxu0
    %354 = vmatprep.mubr.f32.mxu0 0.0
    %355 = vmatmul.mubr.f32.gmra.mrb[0].mxu0 %v149
    %v356 = vpop.f32.mrb[0].mxu0
    %v357 = vadd.f32 0.0, %v356
    %v358 = vpop.f32.mrb[0].mxu0
    %359 = vmatprep.mubr.f32.mxu0 0.0
    %360 = vmatmul.mubr.f32.gmra.mrb[0].mxu0 %v152
    %v361 = vpop.f32.mrb[0].mxu0
    %v362 = vadd.f32 0.0, %v361
    %v363 = vpop.f32.mrb[0].mxu0
    %364 = vmatprep.mubr.f32.mxu0 0.0
    %365 = vmatmul.mubr.f32.gmra.mrb[0].mxu0 %v155
    %v366 = vpop.f32.mrb[0].mxu0
    %v367 = vadd.f32 0.0, %v366
    %v368 = vpop.f32.mrb[0].mxu0
    %369 = vmatprep.mubr.f32.mxu0 0.0
    %370 = vmatmul.mubr.f32.gmra.mrb[0].mxu0 %v158
    %v371 = vpop.f32.mrb[0].mxu0
    %v372 = vadd.f32 0.0, %v371
    %v373 = vpop.f32.mrb[0].mxu0
    %374 = vmatprep.mubr.f32.mxu0 0.0
    %375 = vmatmul.mubr.f32.gmra.mrb[0].mxu0 %v161
    %v376 = vpop.f32.mrb[0].mxu0
    %v377 = vadd.f32 0.0, %v376
    %v378 = vpop.f32.mrb[0].mxu0
    %379 = vmatprep.mubr.f32.mxu0 0.0
    %380 = vmatmul.mubr.f32.gmra.mrb[0].mxu0 %v164
    %v381 = vpop.f32.mrb[0].mxu0
    %v382 = vadd.f32 0.0, %v381
    %v383 = vpop.f32.mrb[0].mxu0
    %384 = vmatprep.mubr.f32.mxu0 0.0
    %385 = vmatmul.mubr.f32.gmra.mrb[0].mxu0 %v167
    %v386 = vpop.f32.mrb[0].mxu0
    %v387 = vadd.f32 0.0, %v386
    %v388 = vpop.f32.mrb[0].mxu0
    %389 = vmatprep.mubr.f32.mxu0 0.0
    %390 = vmatmul.mubr.f32.gmra.mrb[0].mxu0 %v170
    %v391 = vpop.f32.mrb[0].mxu0
    %v392 = vadd.f32 0.0, %v391
    %v393 = vpop.f32.mrb[0].mxu0
    %394 = vmatprep.mubr.f32.mxu0 0.0
    %395 = vmatmul.mubr.f32.gmra.mrb[0].mxu0 %v173
    %v396 = vpop.f32.mrb[0].mxu0
    %v397 = vadd.f32 0.0, %v396
    %v398 = vpop.f32.mrb[0].mxu0
    %399 = vdwg.mxu0
    %v400 = vld [vmem:[#allocation2] sm:$0xff]
    %v401 = vld [vmem:[#allocation2 + $0x8] sm:$0xff]
    %v402 = vld [vmem:[#allocation2 + $0x10] sm:$0xff]
    %v403 = vld [vmem:[#allocation2 + $0x18] sm:$0xff]
    %v404 = vld [vmem:[#allocation2 + $0x20] sm:$0xff]
    %v405 = vld [vmem:[#allocation2 + $0x28] sm:$0xff]
    %v406 = vld [vmem:[#allocation2 + $0x30] sm:$0xff]
    %v407 = vld [vmem:[#allocation2 + $0x38] sm:$0xff]
    %v408 = vld [vmem:[#allocation2 + $0x40] sm:$0xff]
    %v409 = vld [vmem:[#allocation2 + $0x48] sm:$0xff]
    %v410 = vld [vmem:[#allocation2 + $0x50] sm:$0xff]
    %v411 = vld [vmem:[#allocation2 + $0x58] sm:$0xff]
    %v412 = vld [vmem:[#allocation2 + $0x60] sm:$0xff]
    %v413 = vld [vmem:[#allocation2 + $0x68] sm:$0xff]
    %v414 = vld [vmem:[#allocation2 + $0x70] sm:$0xff]
    %v415 = vld [vmem:[#allocation2 + $0x78] sm:$0xff]
    %v416 = vld [vmem:[#allocation2 + $0x80] sm:$0xff]
    %v417 = vld [vmem:[#allocation2 + $0x88] sm:$0xff]
    %v418 = vld [vmem:[#allocation2 + $0x90] sm:$0xff]
    %v419 = vld [vmem:[#allocation2 + $0x98] sm:$0xff]
    %v420 = vld [vmem:[#allocation2 + $0xa0] sm:$0xff]
    %v421 = vld [vmem:[#allocation2 + $0xa8] sm:$0xff]
    %v422 = vld [vmem:[#allocation2 + $0xb0] sm:$0xff]
    %v423 = vld [vmem:[#allocation2 + $0xb8] sm:$0xff]
    %v424 = vld [vmem:[#allocation2 + $0xc0] sm:$0xff]
    %v425 = vld [vmem:[#allocation2 + $0xc8] sm:$0xff]
    %v426 = vld [vmem:[#allocation2 + $0xd0] sm:$0xff]
    %v427 = vld [vmem:[#allocation2 + $0xd8] sm:$0xff]
    %v428 = vld [vmem:[#allocation2 + $0xe0] sm:$0xff]
    %v429 = vld [vmem:[#allocation2 + $0xe8] sm:$0xff]
    %v430 = vld [vmem:[#allocation2 + $0xf0] sm:$0xff]
    %v431 = vld [vmem:[#allocation2 + $0xf8] sm:$0xff]
    %v432 = vld [vmem:[#allocation2 + $0x100] sm:$0xff]
    %v433 = vld [vmem:[#allocation2 + $0x108] sm:$0xff]
    %v434 = vld [vmem:[#allocation2 + $0x110] sm:$0xff]
    %v435 = vld [vmem:[#allocation2 + $0x118] sm:$0xff]
    %v436 = vld [vmem:[#allocation2 + $0x120] sm:$0xff]
    %v437 = vld [vmem:[#allocation2 + $0x128] sm:$0xff]
    %v438 = vld [vmem:[#allocation2 + $0x130] sm:$0xff]
    %v439 = vld [vmem:[#allocation2 + $0x138] sm:$0xff]
    %v440 = vld [vmem:[#allocation2 + $0x140] sm:$0xff]
    %v441 = vld [vmem:[#allocation2 + $0x148] sm:$0xff]
    %v442 = vld [vmem:[#allocation2 + $0x150] sm:$0xff]
    %v443 = vld [vmem:[#allocation2 + $0x158] sm:$0xff]
    %v444 = vld [vmem:[#allocation2 + $0x160] sm:$0xff]
    %v445 = vld [vmem:[#allocation2 + $0x168] sm:$0xff]
    %v446 = vld [vmem:[#allocation2 + $0x170] sm:$0xff]
    %v447 = vld [vmem:[#allocation2 + $0x178] sm:$0xff]
    %v448 = vld [vmem:[#allocation2 + $0x180] sm:$0xff]
    %v449 = vld [vmem:[#allocation2 + $0x188] sm:$0xff]
    %v450 = vld [vmem:[#allocation2 + $0x190] sm:$0xff]
    %v451 = vld [vmem:[#allocation2 + $0x198] sm:$0xff]
    %v452 = vld [vmem:[#allocation2 + $0x1a0] sm:$0xff]
    %v453 = vld [vmem:[#allocation2 + $0x1a8] sm:$0xff]
    %v454 = vld [vmem:[#allocation2 + $0x1b0] sm:$0xff]
    %v455 = vld [vmem:[#allocation2 + $0x1b8] sm:$0xff]
    %v456 = vld [vmem:[#allocation2 + $0x1c0] sm:$0xff]
    %v457 = vld [vmem:[#allocation2 + $0x1c8] sm:$0xff]
    %v458 = vld [vmem:[#allocation2 + $0x1d0] sm:$0xff]
    %v459 = vld [vmem:[#allocation2 + $0x1d8] sm:$0xff]
    %v460 = vld [vmem:[#allocation2 + $0x1e0] sm:$0xff]
    %v461 = vld [vmem:[#allocation2 + $0x1e8] sm:$0xff]
    %v462 = vld [vmem:[#allocation2 + $0x1f0] sm:$0xff]
    %v463 = vld [vmem:[#allocation2 + $0x1f8] sm:$0xff]
    %v464 = vld [vmem:[%s3] sm:$0x1]
    %v466 = vlaneseq
    %v467 = vshrl.u32 %v466, 7
    %v468 = vsub.s32 0, %v467
    %v469 = vrot.slane %v464, %v468
    %471 = vmatprep.subr.mxu0 0.0
    %472 = vmatpush1.msra.mxu0 %v242
    %473 = vmatprep.subr.mxu0 0.0
    %474 = vmatpush1.msra.mxu0 %v247
    %475 = vmatprep.subr.mxu0 0.0
    %476 = vmatpush1.msra.mxu0 %v252
    %477 = vmatprep.subr.mxu0 0.0
    %478 = vmatpush1.msra.mxu0 %v257
    %479 = vmatprep.subr.mxu0 0.0
    %480 = vmatpush1.msra.mxu0 %v262
    %481 = vmatprep.subr.mxu0 0.0
    %482 = vmatpush1.msra.mxu0 %v267
    %483 = vmatprep.subr.mxu0 0.0
    %484 = vmatpush1.msra.mxu0 %v272
    %485 = vmatprep.subr.mxu0 0.0
    %486 = vmatpush1.msra.mxu0 %v277
    %487 = vmatprep.subr.mxu0 0.0
    %488 = vmatpush1.msra.mxu0 %v282
    %489 = vmatprep.subr.mxu0 0.0
    %490 = vmatpush1.msra.mxu0 %v287
    %491 = vmatprep.subr.mxu0 0.0
    %492 = vmatpush1.msra.mxu0 %v292
    %493 = vmatprep.subr.mxu0 0.0
    %494 = vmatpush1.msra.mxu0 %v297
    %495 = vmatprep.subr.mxu0 0.0
    %496 = vmatpush1.msra.mxu0 %v302
    %497 = vmatprep.subr.mxu0 0.0
    %498 = vmatpush1.msra.mxu0 %v307
    %499 = vmatprep.subr.mxu0 0.0
    %500 = vmatpush1.msra.mxu0 %v312
    %501 = vmatprep.subr.mxu0 0.0
    %502 = vmatpush1.msra.mxu0 %v317
    %503 = vmatprep.subr.mxu0 0.0
    %504 = vmatpush1.msra.mxu0 %v322
    %505 = vmatprep.subr.mxu0 0.0
    %506 = vmatpush1.msra.mxu0 %v327
    %507 = vmatprep.subr.mxu0 0.0
    %508 = vmatpush1.msra.mxu0 %v332
    %509 = vmatprep.subr.mxu0 0.0
    %510 = vmatpush1.msra.mxu0 %v337
    %511 = vmatprep.subr.mxu0 0.0
    %512 = vmatpush1.msra.mxu0 %v342
    %513 = vmatprep.subr.mxu0 0.0
    %514 = vmatpush1.msra.mxu0 %v347
    %515 = vmatprep.subr.mxu0 0.0
    %516 = vmatpush1.msra.mxu0 %v352
    %517 = vmatprep.subr.mxu0 0.0
    %518 = vmatpush1.msra.mxu0 %v357
    %519 = vmatprep.subr.mxu0 0.0
    %520 = vmatpush1.msra.mxu0 %v362
    %521 = vmatprep.subr.mxu0 0.0
    %522 = vmatpush1.msra.mxu0 %v367
    %523 = vmatprep.subr.mxu0 0.0
    %524 = vmatpush1.msra.mxu0 %v372
    %525 = vmatprep.subr.mxu0 0.0
    %526 = vmatpush1.msra.mxu0 %v377
    %527 = vmatprep.subr.mxu0 0.0
    %528 = vmatpush1.msra.mxu0 %v382
    %529 = vmatprep.subr.mxu0 0.0
    %530 = vmatpush1.msra.mxu0 %v387
    %531 = vmatprep.subr.mxu0 0.0
    %532 = vmatpush1.msra.mxu0 %v392
    %533 = vmatprep.subr.mxu0 0.0
    %534 = vmatpush1.msra.mxu0 %v397
    %535 = vmatprep.mubr.f32.mxu0 %v401
    %536 = vmatmul.mubr.f32.gmra.mrb[0].mxu0 %v400
    %v537 = vpop.f32.mrb[0].mxu0
    %v538 = vadd.f32 %v469, %v537
    %v539 = vpop.f32.mrb[0].mxu0
    %540 = vmatprep.mubr.f32.mxu0 %v403
    %541 = vmatmul.mubr.f32.gmra.mrb[0].mxu0 %v402
    %v542 = vpop.f32.mrb[0].mxu0
    %v543 = vadd.f32 %v469, %v542
    %v544 = vpop.f32.mrb[0].mxu0
    %545 = vmatprep.mubr.f32.mxu0 %v405
    %546 = vmatmul.mubr.f32.gmra.mrb[0].mxu0 %v404
    %v547 = vpop.f32.mrb[0].mxu0
    %v548 = vadd.f32 %v469, %v547
    %v549 = vpop.f32.mrb[0].mxu0
    %550 = vmatprep.mubr.f32.mxu0 %v407
    %551 = vmatmul.mubr.f32.gmra.mrb[0].mxu0 %v406
    %v552 = vpop.f32.mrb[0].mxu0
    %v553 = vadd.f32 %v469, %v552
    %v554 = vpop.f32.mrb[0].mxu0
    %555 = vmatprep.mubr.f32.mxu0 %v409
    %556 = vmatmul.mubr.f32.gmra.mrb[0].mxu0 %v408
    %v557 = vpop.f32.mrb[0].mxu0
    %v558 = vadd.f32 %v469, %v557
    %v559 = vpop.f32.mrb[0].mxu0
    %560 = vmatprep.mubr.f32.mxu0 %v411
    %561 = vmatmul.mubr.f32.gmra.mrb[0].mxu0 %v410
    %v562 = vpop.f32.mrb[0].mxu0
    %v563 = vadd.f32 %v469, %v562
    %v564 = vpop.f32.mrb[0].mxu0
    %565 = vmatprep.mubr.f32.mxu0 %v413
    %566 = vmatmul.mubr.f32.gmra.mrb[0].mxu0 %v412
    %v567 = vpop.f32.mrb[0].mxu0
    %v568 = vadd.f32 %v469, %v567
    %v569 = vpop.f32.mrb[0].mxu0
    %570 = vmatprep.mubr.f32.mxu0 %v415
    %571 = vmatmul.mubr.f32.gmra.mrb[0].mxu0 %v414
    %v572 = vpop.f32.mrb[0].mxu0
    %v573 = vadd.f32 %v469, %v572
    %v574 = vpop.f32.mrb[0].mxu0
    %575 = vmatprep.mubr.f32.mxu0 %v417
    %576 = vmatmul.mubr.f32.gmra.mrb[0].mxu0 %v416
    %v577 = vpop.f32.mrb[0].mxu0
    %v578 = vadd.f32 %v469, %v577
    %v579 = vpop.f32.mrb[0].mxu0
    %580 = vmatprep.mubr.f32.mxu0 %v419
    %581 = vmatmul.mubr.f32.gmra.mrb[0].mxu0 %v418
    %v582 = vpop.f32.mrb[0].mxu0
    %v583 = vadd.f32 %v469, %v582
    %v584 = vpop.f32.mrb[0].mxu0
    %585 = vmatprep.mubr.f32.mxu0 %v421
    %586 = vmatmul.mubr.f32.gmra.mrb[0].mxu0 %v420
    %v587 = vpop.f32.mrb[0].mxu0
    %v588 = vadd.f32 %v469, %v587
    %v589 = vpop.f32.mrb[0].mxu0
    %590 = vmatprep.mubr.f32.mxu0 %v423
    %591 = vmatmul.mubr.f32.gmra.mrb[0].mxu0 %v422
    %v592 = vpop.f32.mrb[0].mxu0
    %v593 = vadd.f32 %v469, %v592
    %v594 = vpop.f32.mrb[0].mxu0
    %595 = vmatprep.mubr.f32.mxu0 %v425
    %596 = vmatmul.mubr.f32.gmra.mrb[0].mxu0 %v424
    %v597 = vpop.f32.mrb[0].mxu0
    %v598 = vadd.f32 %v469, %v597
    %v599 = vpop.f32.mrb[0].mxu0
    %600 = vmatprep.mubr.f32.mxu0 %v427
    %601 = vmatmul.mubr.f32.gmra.mrb[0].mxu0 %v426
    %v602 = vpop.f32.mrb[0].mxu0
    %v603 = vadd.f32 %v469, %v602
    %v604 = vpop.f32.mrb[0].mxu0
    %605 = vmatprep.mubr.f32.mxu0 %v429
    %606 = vmatmul.mubr.f32.gmra.mrb[0].mxu0 %v428
    %v607 = vpop.f32.mrb[0].mxu0
    %v608 = vadd.f32 %v469, %v607
    %v609 = vpop.f32.mrb[0].mxu0
    %610 = vmatprep.mubr.f32.mxu0 %v431
    %611 = vmatmul.mubr.f32.gmra.mrb[0].mxu0 %v430
    %v612 = vpop.f32.mrb[0].mxu0
    %v613 = vadd.f32 %v469, %v612
    %v614 = vpop.f32.mrb[0].mxu0
    %615 = vmatprep.mubr.f32.mxu0 %v433
    %616 = vmatmul.mubr.f32.gmra.mrb[0].mxu0 %v432
    %v617 = vpop.f32.mrb[0].mxu0
    %v618 = vadd.f32 %v469, %v617
    %v619 = vpop.f32.mrb[0].mxu0
    %620 = vmatprep.mubr.f32.mxu0 %v435
    %621 = vmatmul.mubr.f32.gmra.mrb[0].mxu0 %v434
    %v622 = vpop.f32.mrb[0].mxu0
    %v623 = vadd.f32 %v469, %v622
    %v624 = vpop.f32.mrb[0].mxu0
    %625 = vmatprep.mubr.f32.mxu0 %v437
    %626 = vmatmul.mubr.f32.gmra.mrb[0].mxu0 %v436
    %v627 = vpop.f32.mrb[0].mxu0
    %v628 = vadd.f32 %v469, %v627
    %v629 = vpop.f32.mrb[0].mxu0
    %630 = vmatprep.mubr.f32.mxu0 %v439
    %631 = vmatmul.mubr.f32.gmra.mrb[0].mxu0 %v438
    %v632 = vpop.f32.mrb[0].mxu0
    %v633 = vadd.f32 %v469, %v632
    %v634 = vpop.f32.mrb[0].mxu0
    %635 = vmatprep.mubr.f32.mxu0 %v441
    %636 = vmatmul.mubr.f32.gmra.mrb[0].mxu0 %v440
    %v637 = vpop.f32.mrb[0].mxu0
    %v638 = vadd.f32 %v469, %v637
    %v639 = vpop.f32.mrb[0].mxu0
    %640 = vmatprep.mubr.f32.mxu0 %v443
    %641 = vmatmul.mubr.f32.gmra.mrb[0].mxu0 %v442
    %v642 = vpop.f32.mrb[0].mxu0
    %v643 = vadd.f32 %v469, %v642
    %v644 = vpop.f32.mrb[0].mxu0
    %645 = vmatprep.mubr.f32.mxu0 %v445
    %646 = vmatmul.mubr.f32.gmra.mrb[0].mxu0 %v444
    %v647 = vpop.f32.mrb[0].mxu0
    %v648 = vadd.f32 %v469, %v647
    %v649 = vpop.f32.mrb[0].mxu0
    %650 = vmatprep.mubr.f32.mxu0 %v447
    %651 = vmatmul.mubr.f32.gmra.mrb[0].mxu0 %v446
    %v652 = vpop.f32.mrb[0].mxu0
    %v653 = vadd.f32 %v469, %v652
    %v654 = vpop.f32.mrb[0].mxu0
    %655 = vmatprep.mubr.f32.mxu0 %v449
    %656 = vmatmul.mubr.f32.gmra.mrb[0].mxu0 %v448
    %v657 = vpop.f32.mrb[0].mxu0
    %v658 = vadd.f32 %v469, %v657
    %v659 = vpop.f32.mrb[0].mxu0
    %660 = vmatprep.mubr.f32.mxu0 %v451
    %661 = vmatmul.mubr.f32.gmra.mrb[0].mxu0 %v450
    %v662 = vpop.f32.mrb[0].mxu0
    %v663 = vadd.f32 %v469, %v662
    %v664 = vpop.f32.mrb[0].mxu0
    %665 = vmatprep.mubr.f32.mxu0 %v453
    %666 = vmatmul.mubr.f32.gmra.mrb[0].mxu0 %v452
    %v667 = vpop.f32.mrb[0].mxu0
    %v668 = vadd.f32 %v469, %v667
    %v669 = vpop.f32.mrb[0].mxu0
    %670 = vmatprep.mubr.f32.mxu0 %v455
    %671 = vmatmul.mubr.f32.gmra.mrb[0].mxu0 %v454
    %v672 = vpop.f32.mrb[0].mxu0
    %v673 = vadd.f32 %v469, %v672
    %v674 = vpop.f32.mrb[0].mxu0
    %675 = vmatprep.mubr.f32.mxu0 %v457
    %676 = vmatmul.mubr.f32.gmra.mrb[0].mxu0 %v456
    %v677 = vpop.f32.mrb[0].mxu0
    %v678 = vadd.f32 %v469, %v677
    %v679 = vpop.f32.mrb[0].mxu0
    %680 = vmatprep.mubr.f32.mxu0 %v459
    %681 = vmatmul.mubr.f32.gmra.mrb[0].mxu0 %v458
    %v682 = vpop.f32.mrb[0].mxu0
    %v683 = vadd.f32 %v469, %v682
    %v684 = vpop.f32.mrb[0].mxu0
    %685 = vmatprep.mubr.f32.mxu0 %v461
    %686 = vmatmul.mubr.f32.gmra.mrb[0].mxu0 %v460
    %v687 = vpop.f32.mrb[0].mxu0
    %v688 = vadd.f32 %v469, %v687
    %v689 = vpop.f32.mrb[0].mxu0
    %690 = vmatprep.mubr.f32.mxu0 %v463
    %691 = vmatmul.mubr.f32.gmra.mrb[0].mxu0 %v462
    %v692 = vpop.f32.mrb[0].mxu0
    %v693 = vadd.f32 %v469, %v692
    %v694 = vpop.f32.mrb[0].mxu0
    %695 = vdwg.mxu0
    %v696 = vmax.f32 %v538, 0.0
    %v697 = vmax.f32 %v543, 0.0
    %v698 = vmax.f32 %v548, 0.0
    %v699 = vmax.f32 %v553, 0.0
    %v700 = vmax.f32 %v558, 0.0
    %v701 = vmax.f32 %v563, 0.0
    %v702 = vmax.f32 %v568, 0.0
    %v703 = vmax.f32 %v573, 0.0
    %v704 = vmax.f32 %v578, 0.0
    %v705 = vmax.f32 %v583, 0.0
    %v706 = vmax.f32 %v588, 0.0
    %v707 = vmax.f32 %v593, 0.0
    %v708 = vmax.f32 %v598, 0.0
    %v709 = vmax.f32 %v603, 0.0
    %v710 = vmax.f32 %v608, 0.0
    %v711 = vmax.f32 %v613, 0.0
    %v712 = vmax.f32 %v618, 0.0
    %v713 = vmax.f32 %v623, 0.0
    %v714 = vmax.f32 %v628, 0.0
    %v715 = vmax.f32 %v633, 0.0
    %v716 = vmax.f32 %v638, 0.0
    %v717 = vmax.f32 %v643, 0.0
    %v718 = vmax.f32 %v648, 0.0
    %v719 = vmax.f32 %v653, 0.0
    %v720 = vmax.f32 %v658, 0.0
    %v721 = vmax.f32 %v663, 0.0
    %v722 = vmax.f32 %v668, 0.0
    %v723 = vmax.f32 %v673, 0.0
    %v724 = vmax.f32 %v678, 0.0
    %v725 = vmax.f32 %v683, 0.0
    %v726 = vmax.f32 %v688, 0.0
    %v727 = vmax.f32 %v693, 0.0
    %v728 = vld [vmem:[%s4] sm:$0xff]
    %v729 = vld [vmem:[%s4 + $0x8] sm:$0xff]
    %v730 = vld [vmem:[%s4 + $0x10] sm:$0xff]
    %v731 = vld [vmem:[%s4 + $0x18] sm:$0xff]
    %v732 = vld [vmem:[%s4 + $0x20] sm:$0xff]
    %v733 = vld [vmem:[%s4 + $0x28] sm:$0xff]
    %v734 = vld [vmem:[%s4 + $0x30] sm:$0xff]
    %v735 = vld [vmem:[%s4 + $0x38] sm:$0xff]
    %v736 = vld [vmem:[%s4 + $0x40] sm:$0xff]
    %v737 = vld [vmem:[%s4 + $0x48] sm:$0xff]
    %v738 = vld [vmem:[%s4 + $0x50] sm:$0xff]
    %v739 = vld [vmem:[%s4 + $0x58] sm:$0xff]
    %v740 = vld [vmem:[%s4 + $0x60] sm:$0xff]
    %v741 = vld [vmem:[%s4 + $0x68] sm:$0xff]
    %v742 = vld [vmem:[%s4 + $0x70] sm:$0xff]
    %v743 = vld [vmem:[%s4 + $0x78] sm:$0xff]
    %744 = vmatprep.subr.mxu0 0.0
    %745 = vmatpush1.msra.mxu0 %v728
    %746 = vmatprep.subr.mxu0 0.0
    %747 = vmatpush1.msra.mxu0 %v729
    %748 = vmatprep.subr.mxu0 0.0
    %749 = vmatpush1.msra.mxu0 %v730
    %750 = vmatprep.subr.mxu0 0.0
    %751 = vmatpush1.msra.mxu0 %v731
    %752 = vmatprep.subr.mxu0 0.0
    %753 = vmatpush1.msra.mxu0 %v732
    %754 = vmatprep.subr.mxu0 0.0
    %755 = vmatpush1.msra.mxu0 %v733
    %756 = vmatprep.subr.mxu0 0.0
    %757 = vmatpush1.msra.mxu0 %v734
    %758 = vmatprep.subr.mxu0 0.0
    %759 = vmatpush1.msra.mxu0 %v735
    %760 = vmatprep.subr.mxu0 0.0
    %761 = vmatpush1.msra.mxu0 %v736
    %762 = vmatprep.subr.mxu0 0.0
    %763 = vmatpush1.msra.mxu0 %v737
    %764 = vmatprep.subr.mxu0 0.0
    %765 = vmatpush1.msra.mxu0 %v738
    %766 = vmatprep.subr.mxu0 0.0
    %767 = vmatpush1.msra.mxu0 %v739
    %768 = vmatprep.subr.mxu0 0.0
    %769 = vmatpush1.msra.mxu0 %v740
    %770 = vmatprep.subr.mxu0 0.0
    %771 = vmatpush1.msra.mxu0 %v741
    %772 = vmatprep.subr.mxu0 0.0
    %773 = vmatpush1.msra.mxu0 %v742
    %774 = vmatprep.subr.mxu0 0.0
    %775 = vmatpush1.msra.mxu0 %v743
    %776 = vmatprep.subr.mxu0 0.0
    %777 = vmatpush1.msra.mxu0 0.0
    %778 = vmatprep.subr.mxu0 0.0
    %779 = vmatpush1.msra.mxu0 0.0
    %780 = vmatprep.subr.mxu0 0.0
    %781 = vmatpush1.msra.mxu0 0.0
    %782 = vmatprep.subr.mxu0 0.0
    %783 = vmatpush1.msra.mxu0 0.0
    %784 = vmatprep.subr.mxu0 0.0
    %785 = vmatpush1.msra.mxu0 0.0
    %786 = vmatprep.subr.mxu0 0.0
    %787 = vmatpush1.msra.mxu0 0.0
    %788 = vmatprep.subr.mxu0 0.0
    %789 = vmatpush1.msra.mxu0 0.0
    %790 = vmatprep.subr.mxu0 0.0
    %791 = vmatpush1.msra.mxu0 0.0
    %792 = vmatprep.subr.mxu0 0.0
    %793 = vmatpush1.msra.mxu0 0.0
    %794 = vmatprep.subr.mxu0 0.0
    %795 = vmatpush1.msra.mxu0 0.0
    %796 = vmatprep.subr.mxu0 0.0
    %797 = vmatpush1.msra.mxu0 0.0
    %798 = vmatprep.subr.mxu0 0.0
    %799 = vmatpush1.msra.mxu0 0.0
    %800 = vmatprep.subr.mxu0 0.0
    %801 = vmatpush1.msra.mxu0 0.0
    %802 = vmatprep.subr.mxu0 0.0
    %803 = vmatpush1.msra.mxu0 0.0
    %804 = vmatprep.subr.mxu0 0.0
    %805 = vmatpush1.msra.mxu0 0.0
    %806 = vmatprep.subr.mxu0 0.0
    %807 = vmatpush1.msra.mxu0 0.0
    %808 = vmatprep.mubr.f32.mxu0 0.0
    %809 = vmatmul.mubr.f32.gmra.mrb[0].mxu0 %v696
    %v810 = vpop.f32.mrb[0].mxu0
    %v811 = vadd.f32 0.0, %v810
    %v812 = vpop.f32.mrb[0].mxu0
    %813 = vmatprep.mubr.f32.mxu0 0.0
    %814 = vmatmul.mubr.f32.gmra.mrb[0].mxu0 %v697
    %v815 = vpop.f32.mrb[0].mxu0
    %v816 = vadd.f32 0.0, %v815
    %v817 = vpop.f32.mrb[0].mxu0
    %818 = vmatprep.mubr.f32.mxu0 0.0
    %819 = vmatmul.mubr.f32.gmra.mrb[0].mxu0 %v698
    %v820 = vpop.f32.mrb[0].mxu0
    %v821 = vadd.f32 0.0, %v820
    %v822 = vpop.f32.mrb[0].mxu0
    %823 = vmatprep.mubr.f32.mxu0 0.0
    %824 = vmatmul.mubr.f32.gmra.mrb[0].mxu0 %v699
    %v825 = vpop.f32.mrb[0].mxu0
    %v826 = vadd.f32 0.0, %v825
    %v827 = vpop.f32.mrb[0].mxu0
    %828 = vmatprep.mubr.f32.mxu0 0.0
    %829 = vmatmul.mubr.f32.gmra.mrb[0].mxu0 %v700
    %v830 = vpop.f32.mrb[0].mxu0
    %v831 = vadd.f32 0.0, %v830
    %v832 = vpop.f32.mrb[0].mxu0
    %833 = vmatprep.mubr.f32.mxu0 0.0
    %834 = vmatmul.mubr.f32.gmra.mrb[0].mxu0 %v701
    %v835 = vpop.f32.mrb[0].mxu0
    %v836 = vadd.f32 0.0, %v835
    %v837 = vpop.f32.mrb[0].mxu0
    %838 = vmatprep.mubr.f32.mxu0 0.0
    %839 = vmatmul.mubr.f32.gmra.mrb[0].mxu0 %v702
    %v840 = vpop.f32.mrb[0].mxu0
    %v841 = vadd.f32 0.0, %v840
    %v842 = vpop.f32.mrb[0].mxu0
    %843 = vmatprep.mubr.f32.mxu0 0.0
    %844 = vmatmul.mubr.f32.gmra.mrb[0].mxu0 %v703
    %v845 = vpop.f32.mrb[0].mxu0
    %v846 = vadd.f32 0.0, %v845
    %v847 = vpop.f32.mrb[0].mxu0
    %848 = vmatprep.mubr.f32.mxu0 0.0
    %849 = vmatmul.mubr.f32.gmra.mrb[0].mxu0 %v704
    %v850 = vpop.f32.mrb[0].mxu0
    %v851 = vadd.f32 0.0, %v850
    %v852 = vpop.f32.mrb[0].mxu0
    %853 = vmatprep.mubr.f32.mxu0 0.0
    %854 = vmatmul.mubr.f32.gmra.mrb[0].mxu0 %v705
    %v855 = vpop.f32.mrb[0].mxu0
    %v856 = vadd.f32 0.0, %v855
    %v857 = vpop.f32.mrb[0].mxu0
    %858 = vmatprep.mubr.f32.mxu0 0.0
    %859 = vmatmul.mubr.f32.gmra.mrb[0].mxu0 %v706
    %v860 = vpop.f32.mrb[0].mxu0
    %v861 = vadd.f32 0.0, %v860
    %v862 = vpop.f32.mrb[0].mxu0
    %863 = vmatprep.mubr.f32.mxu0 0.0
    %864 = vmatmul.mubr.f32.gmra.mrb[0].mxu0 %v707
    %v865 = vpop.f32.mrb[0].mxu0
    %v866 = vadd.f32 0.0, %v865
    %v867 = vpop.f32.mrb[0].mxu0
    %868 = vmatprep.mubr.f32.mxu0 0.0
    %869 = vmatmul.mubr.f32.gmra.mrb[0].mxu0 %v708
    %v870 = vpop.f32.mrb[0].mxu0
    %v871 = vadd.f32 0.0, %v870
    %v872 = vpop.f32.mrb[0].mxu0
    %873 = vmatprep.mubr.f32.mxu0 0.0
    %874 = vmatmul.mubr.f32.gmra.mrb[0].mxu0 %v709
    %v875 = vpop.f32.mrb[0].mxu0
    %v876 = vadd.f32 0.0, %v875
    %v877 = vpop.f32.mrb[0].mxu0
    %878 = vmatprep.mubr.f32.mxu0 0.0
    %879 = vmatmul.mubr.f32.gmra.mrb[0].mxu0 %v710
    %v880 = vpop.f32.mrb[0].mxu0
    %v881 = vadd.f32 0.0, %v880
    %v882 = vpop.f32.mrb[0].mxu0
    %883 = vmatprep.mubr.f32.mxu0 0.0
    %884 = vmatmul.mubr.f32.gmra.mrb[0].mxu0 %v711
    %v885 = vpop.f32.mrb[0].mxu0
    %v886 = vadd.f32 0.0, %v885
    %v887 = vpop.f32.mrb[0].mxu0
    %888 = vmatprep.mubr.f32.mxu0 0.0
    %889 = vmatmul.mubr.f32.gmra.mrb[0].mxu0 %v712
    %v890 = vpop.f32.mrb[0].mxu0
    %v891 = vadd.f32 0.0, %v890
    %v892 = vpop.f32.mrb[0].mxu0
    %893 = vmatprep.mubr.f32.mxu0 0.0
    %894 = vmatmul.mubr.f32.gmra.mrb[0].mxu0 %v713
    %v895 = vpop.f32.mrb[0].mxu0
    %v896 = vadd.f32 0.0, %v895
    %v897 = vpop.f32.mrb[0].mxu0
    %898 = vmatprep.mubr.f32.mxu0 0.0
    %899 = vmatmul.mubr.f32.gmra.mrb[0].mxu0 %v714
    %v900 = vpop.f32.mrb[0].mxu0
    %v901 = vadd.f32 0.0, %v900
    %v902 = vpop.f32.mrb[0].mxu0
    %903 = vmatprep.mubr.f32.mxu0 0.0
    %904 = vmatmul.mubr.f32.gmra.mrb[0].mxu0 %v715
    %v905 = vpop.f32.mrb[0].mxu0
    %v906 = vadd.f32 0.0, %v905
    %v907 = vpop.f32.mrb[0].mxu0
    %908 = vmatprep.mubr.f32.mxu0 0.0
    %909 = vmatmul.mubr.f32.gmra.mrb[0].mxu0 %v716
    %v910 = vpop.f32.mrb[0].mxu0
    %v911 = vadd.f32 0.0, %v910
    %v912 = vpop.f32.mrb[0].mxu0
    %913 = vmatprep.mubr.f32.mxu0 0.0
    %914 = vmatmul.mubr.f32.gmra.mrb[0].mxu0 %v717
    %v915 = vpop.f32.mrb[0].mxu0
    %v916 = vadd.f32 0.0, %v915
    %v917 = vpop.f32.mrb[0].mxu0
    %918 = vmatprep.mubr.f32.mxu0 0.0
    %919 = vmatmul.mubr.f32.gmra.mrb[0].mxu0 %v718
    %v920 = vpop.f32.mrb[0].mxu0
    %v921 = vadd.f32 0.0, %v920
    %v922 = vpop.f32.mrb[0].mxu0
    %923 = vmatprep.mubr.f32.mxu0 0.0
    %924 = vmatmul.mubr.f32.gmra.mrb[0].mxu0 %v719
    %v925 = vpop.f32.mrb[0].mxu0
    %v926 = vadd.f32 0.0, %v925
    %v927 = vpop.f32.mrb[0].mxu0
    %928 = vmatprep.mubr.f32.mxu0 0.0
    %929 = vmatmul.mubr.f32.gmra.mrb[0].mxu0 %v720
    %v930 = vpop.f32.mrb[0].mxu0
    %v931 = vadd.f32 0.0, %v930
    %v932 = vpop.f32.mrb[0].mxu0
    %933 = vmatprep.mubr.f32.mxu0 0.0
    %934 = vmatmul.mubr.f32.gmra.mrb[0].mxu0 %v721
    %v935 = vpop.f32.mrb[0].mxu0
    %v936 = vadd.f32 0.0, %v935
    %v937 = vpop.f32.mrb[0].mxu0
    %938 = vmatprep.mubr.f32.mxu0 0.0
    %939 = vmatmul.mubr.f32.gmra.mrb[0].mxu0 %v722
    %v940 = vpop.f32.mrb[0].mxu0
    %v941 = vadd.f32 0.0, %v940
    %v942 = vpop.f32.mrb[0].mxu0
    %943 = vmatprep.mubr.f32.mxu0 0.0
    %944 = vmatmul.mubr.f32.gmra.mrb[0].mxu0 %v723
    %v945 = vpop.f32.mrb[0].mxu0
    %v946 = vadd.f32 0.0, %v945
    %v947 = vpop.f32.mrb[0].mxu0
    %948 = vmatprep.mubr.f32.mxu0 0.0
    %949 = vmatmul.mubr.f32.gmra.mrb[0].mxu0 %v724
    %v950 = vpop.f32.mrb[0].mxu0
    %v951 = vadd.f32 0.0, %v950
    %v952 = vpop.f32.mrb[0].mxu0
    %953 = vmatprep.mubr.f32.mxu0 0.0
    %954 = vmatmul.mubr.f32.gmra.mrb[0].mxu0 %v725
    %v955 = vpop.f32.mrb[0].mxu0
    %v956 = vadd.f32 0.0, %v955
    %v957 = vpop.f32.mrb[0].mxu0
    %958 = vmatprep.mubr.f32.mxu0 0.0
    %959 = vmatmul.mubr.f32.gmra.mrb[0].mxu0 %v726
    %v960 = vpop.f32.mrb[0].mxu0
    %v961 = vadd.f32 0.0, %v960
    %v962 = vpop.f32.mrb[0].mxu0
    %963 = vmatprep.mubr.f32.mxu0 0.0
    %964 = vmatmul.mubr.f32.gmra.mrb[0].mxu0 %v727
    %v965 = vpop.f32.mrb[0].mxu0
    %v966 = vadd.f32 0.0, %v965
    %v967 = vpop.f32.mrb[0].mxu0
    %968 = vdwg.mxu0
    %v969 = vld [vmem:[%s5] sm:$0x1]
    %v971 = vlaneseq
    %v972 = vshrl.u32 %v971, 7
    %v973 = vsub.s32 0, %v972
    %v974 = vrot.slane %v969, %v973
    %976 = vmatprep.subr.mxu0 0.0
    %977 = vmatpush1.msra.mxu0 %v811
    %978 = vmatprep.subr.mxu0 0.0
    %979 = vmatpush1.msra.mxu0 %v816
    %980 = vmatprep.subr.mxu0 0.0
    %981 = vmatpush1.msra.mxu0 %v821
    %982 = vmatprep.subr.mxu0 0.0
    %983 = vmatpush1.msra.mxu0 %v826
    %984 = vmatprep.subr.mxu0 0.0
    %985 = vmatpush1.msra.mxu0 %v831
    %986 = vmatprep.subr.mxu0 0.0
    %987 = vmatpush1.msra.mxu0 %v836
    %988 = vmatprep.subr.mxu0 0.0
    %989 = vmatpush1.msra.mxu0 %v841
    %990 = vmatprep.subr.mxu0 0.0
    %991 = vmatpush1.msra.mxu0 %v846
    %992 = vmatprep.subr.mxu0 0.0
    %993 = vmatpush1.msra.mxu0 %v851
    %994 = vmatprep.subr.mxu0 0.0
    %995 = vmatpush1.msra.mxu0 %v856
    %996 = vmatprep.subr.mxu0 0.0
    %997 = vmatpush1.msra.mxu0 %v861
    %998 = vmatprep.subr.mxu0 0.0
    %999 = vmatpush1.msra.mxu0 %v866
    %1000 = vmatprep.subr.mxu0 0.0
    %1001 = vmatpush1.msra.mxu0 %v871
    %1002 = vmatprep.subr.mxu0 0.0
    %1003 = vmatpush1.msra.mxu0 %v876
    %1004 = vmatprep.subr.mxu0 0.0
    %1005 = vmatpush1.msra.mxu0 %v881
    %1006 = vmatprep.subr.mxu0 0.0
    %1007 = vmatpush1.msra.mxu0 %v886
    %1008 = vmatprep.subr.mxu0 0.0
    %1009 = vmatpush1.msra.mxu0 %v891
    %1010 = vmatprep.subr.mxu0 0.0
    %1011 = vmatpush1.msra.mxu0 %v896
    %1012 = vmatprep.subr.mxu0 0.0
    %1013 = vmatpush1.msra.mxu0 %v901
    %1014 = vmatprep.subr.mxu0 0.0
    %1015 = vmatpush1.msra.mxu0 %v906
    %1016 = vmatprep.subr.mxu0 0.0
    %1017 = vmatpush1.msra.mxu0 %v911
    %1018 = vmatprep.subr.mxu0 0.0
    %1019 = vmatpush1.msra.mxu0 %v916
    %1020 = vmatprep.subr.mxu0 0.0
    %1021 = vmatpush1.msra.mxu0 %v921
    %1022 = vmatprep.subr.mxu0 0.0
    %1023 = vmatpush1.msra.mxu0 %v926
    %1024 = vmatprep.subr.mxu0 0.0
    %1025 = vmatpush1.msra.mxu0 %v931
    %1026 = vmatprep.subr.mxu0 0.0
    %1027 = vmatpush1.msra.mxu0 %v936
    %1028 = vmatprep.subr.mxu0 0.0
    %1029 = vmatpush1.msra.mxu0 %v941
    %1030 = vmatprep.subr.mxu0 0.0
    %1031 = vmatpush1.msra.mxu0 %v946
    %1032 = vmatprep.subr.mxu0 0.0
    %1033 = vmatpush1.msra.mxu0 %v951
    %1034 = vmatprep.subr.mxu0 0.0
    %1035 = vmatpush1.msra.mxu0 %v956
    %1036 = vmatprep.subr.mxu0 0.0
    %1037 = vmatpush1.msra.mxu0 %v961
    %1038 = vmatprep.subr.mxu0 0.0
    %1039 = vmatpush1.msra.mxu0 %v966
    %1040 = vmatprep.mubr.f32.mxu0 %v401
    %1041 = vmatmul.mubr.f32.gmra.mrb[0].mxu0 %v400
    %v1042 = vpop.f32.mrb[0].mxu0
    %v1043 = vadd.f32 %v974, %v1042
    %v1044 = vpop.f32.mrb[0].mxu0
    %1045 = vmatprep.mubr.f32.mxu0 %v403
    %1046 = vmatmul.mubr.f32.gmra.mrb[0].mxu0 %v402
    %v1047 = vpop.f32.mrb[0].mxu0
    %v1048 = vadd.f32 %v974, %v1047
    %v1049 = vpop.f32.mrb[0].mxu0
    %1050 = vmatprep.mubr.f32.mxu0 %v405
    %1051 = vmatmul.mubr.f32.gmra.mrb[0].mxu0 %v404
    %v1052 = vpop.f32.mrb[0].mxu0
    %v1053 = vadd.f32 %v974, %v1052
    %v1054 = vpop.f32.mrb[0].mxu0
    %1055 = vmatprep.mubr.f32.mxu0 %v407
    %1056 = vmatmul.mubr.f32.gmra.mrb[0].mxu0 %v406
    %v1057 = vpop.f32.mrb[0].mxu0
    %v1058 = vadd.f32 %v974, %v1057
    %v1059 = vpop.f32.mrb[0].mxu0
    %1060 = vmatprep.mubr.f32.mxu0 %v409
    %1061 = vmatmul.mubr.f32.gmra.mrb[0].mxu0 %v408
    %v1062 = vpop.f32.mrb[0].mxu0
    %v1063 = vadd.f32 %v974, %v1062
    %v1064 = vpop.f32.mrb[0].mxu0
    %1065 = vmatprep.mubr.f32.mxu0 %v411
    %1066 = vmatmul.mubr.f32.gmra.mrb[0].mxu0 %v410
    %v1067 = vpop.f32.mrb[0].mxu0
    %v1068 = vadd.f32 %v974, %v1067
    %v1069 = vpop.f32.mrb[0].mxu0
    %1070 = vmatprep.mubr.f32.mxu0 %v413
    %1071 = vmatmul.mubr.f32.gmra.mrb[0].mxu0 %v412
    %v1072 = vpop.f32.mrb[0].mxu0
    %v1073 = vadd.f32 %v974, %v1072
    %v1074 = vpop.f32.mrb[0].mxu0
    %1075 = vmatprep.mubr.f32.mxu0 %v415
    %1076 = vmatmul.mubr.f32.gmra.mrb[0].mxu0 %v414
    %v1077 = vpop.f32.mrb[0].mxu0
    %v1078 = vadd.f32 %v974, %v1077
    %v1079 = vpop.f32.mrb[0].mxu0
    %1080 = vmatprep.mubr.f32.mxu0 %v417
    %1081 = vmatmul.mubr.f32.gmra.mrb[0].mxu0 %v416
    %v1082 = vpop.f32.mrb[0].mxu0
    %v1083 = vadd.f32 %v974, %v1082
    %v1084 = vpop.f32.mrb[0].mxu0
    %1085 = vmatprep.mubr.f32.mxu0 %v419
    %1086 = vmatmul.mubr.f32.gmra.mrb[0].mxu0 %v418
    %v1087 = vpop.f32.mrb[0].mxu0
    %v1088 = vadd.f32 %v974, %v1087
    %v1089 = vpop.f32.mrb[0].mxu0
    %1090 = vmatprep.mubr.f32.mxu0 %v421
    %1091 = vmatmul.mubr.f32.gmra.mrb[0].mxu0 %v420
    %v1092 = vpop.f32.mrb[0].mxu0
    %v1093 = vadd.f32 %v974, %v1092
    %v1094 = vpop.f32.mrb[0].mxu0
    %1095 = vmatprep.mubr.f32.mxu0 %v423
    %1096 = vmatmul.mubr.f32.gmra.mrb[0].mxu0 %v422
    %v1097 = vpop.f32.mrb[0].mxu0
    %v1098 = vadd.f32 %v974, %v1097
    %v1099 = vpop.f32.mrb[0].mxu0
    %1100 = vmatprep.mubr.f32.mxu0 %v425
    %1101 = vmatmul.mubr.f32.gmra.mrb[0].mxu0 %v424
    %v1102 = vpop.f32.mrb[0].mxu0
    %v1103 = vadd.f32 %v974, %v1102
    %v1104 = vpop.f32.mrb[0].mxu0
    %1105 = vmatprep.mubr.f32.mxu0 %v427
    %1106 = vmatmul.mubr.f32.gmra.mrb[0].mxu0 %v426
    %v1107 = vpop.f32.mrb[0].mxu0
    %v1108 = vadd.f32 %v974, %v1107
    %v1109 = vpop.f32.mrb[0].mxu0
    %1110 = vmatprep.mubr.f32.mxu0 %v429
    %1111 = vmatmul.mubr.f32.gmra.mrb[0].mxu0 %v428
    %v1112 = vpop.f32.mrb[0].mxu0
    %v1113 = vadd.f32 %v974, %v1112
    %v1114 = vpop.f32.mrb[0].mxu0
    %1115 = vmatprep.mubr.f32.mxu0 %v431
    %1116 = vmatmul.mubr.f32.gmra.mrb[0].mxu0 %v430
    %v1117 = vpop.f32.mrb[0].mxu0
    %v1118 = vadd.f32 %v974, %v1117
    %v1119 = vpop.f32.mrb[0].mxu0
    %1120 = vmatprep.mubr.f32.mxu0 %v433
    %1121 = vmatmul.mubr.f32.gmra.mrb[0].mxu0 %v432
    %v1122 = vpop.f32.mrb[0].mxu0
    %v1123 = vadd.f32 %v974, %v1122
    %v1124 = vpop.f32.mrb[0].mxu0
    %1125 = vmatprep.mubr.f32.mxu0 %v435
    %1126 = vmatmul.mubr.f32.gmra.mrb[0].mxu0 %v434
    %v1127 = vpop.f32.mrb[0].mxu0
    %v1128 = vadd.f32 %v974, %v1127
    %v1129 = vpop.f32.mrb[0].mxu0
    %1130 = vmatprep.mubr.f32.mxu0 %v437
    %1131 = vmatmul.mubr.f32.gmra.mrb[0].mxu0 %v436
    %v1132 = vpop.f32.mrb[0].mxu0
    %v1133 = vadd.f32 %v974, %v1132
    %v1134 = vpop.f32.mrb[0].mxu0
    %1135 = vmatprep.mubr.f32.mxu0 %v439
    %1136 = vmatmul.mubr.f32.gmra.mrb[0].mxu0 %v438
    %v1137 = vpop.f32.mrb[0].mxu0
    %v1138 = vadd.f32 %v974, %v1137
    %v1139 = vpop.f32.mrb[0].mxu0
    %1140 = vmatprep.mubr.f32.mxu0 %v441
    %1141 = vmatmul.mubr.f32.gmra.mrb[0].mxu0 %v440
    %v1142 = vpop.f32.mrb[0].mxu0
    %v1143 = vadd.f32 %v974, %v1142
    %v1144 = vpop.f32.mrb[0].mxu0
    %1145 = vmatprep.mubr.f32.mxu0 %v443
    %1146 = vmatmul.mubr.f32.gmra.mrb[0].mxu0 %v442
    %v1147 = vpop.f32.mrb[0].mxu0
    %v1148 = vadd.f32 %v974, %v1147
    %v1149 = vpop.f32.mrb[0].mxu0
    %1150 = vmatprep.mubr.f32.mxu0 %v445
    %1151 = vmatmul.mubr.f32.gmra.mrb[0].mxu0 %v444
    %v1152 = vpop.f32.mrb[0].mxu0
    %v1153 = vadd.f32 %v974, %v1152
    %v1154 = vpop.f32.mrb[0].mxu0
    %1155 = vmatprep.mubr.f32.mxu0 %v447
    %1156 = vmatmul.mubr.f32.gmra.mrb[0].mxu0 %v446
    %v1157 = vpop.f32.mrb[0].mxu0
    %v1158 = vadd.f32 %v974, %v1157
    %v1159 = vpop.f32.mrb[0].mxu0
    %1160 = vmatprep.mubr.f32.mxu0 %v449
    %1161 = vmatmul.mubr.f32.gmra.mrb[0].mxu0 %v448
    %v1162 = vpop.f32.mrb[0].mxu0
    %v1163 = vadd.f32 %v974, %v1162
    %v1164 = vpop.f32.mrb[0].mxu0
    %1165 = vmatprep.mubr.f32.mxu0 %v451
    %1166 = vmatmul.mubr.f32.gmra.mrb[0].mxu0 %v450
    %v1167 = vpop.f32.mrb[0].mxu0
    %v1168 = vadd.f32 %v974, %v1167
    %v1169 = vpop.f32.mrb[0].mxu0
    %1170 = vmatprep.mubr.f32.mxu0 %v453
    %1171 = vmatmul.mubr.f32.gmra.mrb[0].mxu0 %v452
    %v1172 = vpop.f32.mrb[0].mxu0
    %v1173 = vadd.f32 %v974, %v1172
    %v1174 = vpop.f32.mrb[0].mxu0
    %1175 = vmatprep.mubr.f32.mxu0 %v455
    %1176 = vmatmul.mubr.f32.gmra.mrb[0].mxu0 %v454
    %v1177 = vpop.f32.mrb[0].mxu0
    %v1178 = vadd.f32 %v974, %v1177
    %v1179 = vpop.f32.mrb[0].mxu0
    %1180 = vmatprep.mubr.f32.mxu0 %v457
    %1181 = vmatmul.mubr.f32.gmra.mrb[0].mxu0 %v456
    %v1182 = vpop.f32.mrb[0].mxu0
    %v1183 = vadd.f32 %v974, %v1182
    %v1184 = vpop.f32.mrb[0].mxu0
    %1185 = vmatprep.mubr.f32.mxu0 %v459
    %1186 = vmatmul.mubr.f32.gmra.mrb[0].mxu0 %v458
    %v1187 = vpop.f32.mrb[0].mxu0
    %v1188 = vadd.f32 %v974, %v1187
    %v1189 = vpop.f32.mrb[0].mxu0
    %1190 = vmatprep.mubr.f32.mxu0 %v461
    %1191 = vmatmul.mubr.f32.gmra.mrb[0].mxu0 %v460
    %v1192 = vpop.f32.mrb[0].mxu0
    %v1193 = vadd.f32 %v974, %v1192
    %v1194 = vpop.f32.mrb[0].mxu0
    %1195 = vmatprep.mubr.f32.mxu0 %v463
    %1196 = vmatmul.mubr.f32.gmra.mrb[0].mxu0 %v462
    %v1197 = vpop.f32.mrb[0].mxu0
    %v1198 = vadd.f32 %v974, %v1197
    %v1199 = vpop.f32.mrb[0].mxu0
    %1200 = vdwg.mxu0
    %1201 = vst [vmem:[#allocation5] sm:$0xff] %v1043
    %1202 = vst [vmem:[#allocation5 + $0x8] sm:$0xff] %v1048
    %1203 = vst [vmem:[#allocation5 + $0x10] sm:$0xff] %v1053
    %1204 = vst [vmem:[#allocation5 + $0x18] sm:$0xff] %v1058
    %1205 = vst [vmem:[#allocation5 + $0x20] sm:$0xff] %v1063
    %1206 = vst [vmem:[#allocation5 + $0x28] sm:$0xff] %v1068
    %1207 = vst [vmem:[#allocation5 + $0x30] sm:$0xff] %v1073
    %1208 = vst [vmem:[#allocation5 + $0x38] sm:$0xff] %v1078
    %1209 = vst [vmem:[#allocation5 + $0x40] sm:$0xff] %v1083
    %1210 = vst [vmem:[#allocation5 + $0x48] sm:$0xff] %v1088
    %1211 = vst [vmem:[#allocation5 + $0x50] sm:$0xff] %v1093
    %1212 = vst [vmem:[#allocation5 + $0x58] sm:$0xff] %v1098
    %1213 = vst [vmem:[#allocation5 + $0x60] sm:$0xff] %v1103
    %1214 = vst [vmem:[#allocation5 + $0x68] sm:$0xff] %v1108
    %1215 = vst [vmem:[#allocation5 + $0x70] sm:$0xff] %v1113
    %1216 = vst [vmem:[#allocation5 + $0x78] sm:$0xff] %v1118
    %1217 = vst [vmem:[#allocation5 + $0x80] sm:$0xff] %v1123
    %1218 = vst [vmem:[#allocation5 + $0x88] sm:$0xff] %v1128
    %1219 = vst [vmem:[#allocation5 + $0x90] sm:$0xff] %v1133
    %1220 = vst [vmem:[#allocation5 + $0x98] sm:$0xff] %v1138
    %1221 = vst [vmem:[#allocation5 + $0xa0] sm:$0xff] %v1143
    %1222 = vst [vmem:[#allocation5 + $0xa8] sm:$0xff] %v1148
    %1223 = vst [vmem:[#allocation5 + $0xb0] sm:$0xff] %v1153
    %1224 = vst [vmem:[#allocation5 + $0xb8] sm:$0xff] %v1158
    %1225 = vst [vmem:[#allocation5 + $0xc0] sm:$0xff] %v1163
    %1226 = vst [vmem:[#allocation5 + $0xc8] sm:$0xff] %v1168
    %1227 = vst [vmem:[#allocation5 + $0xd0] sm:$0xff] %v1173
    %1228 = vst [vmem:[#allocation5 + $0xd8] sm:$0xff] %v1178
    %1229 = vst [vmem:[#allocation5 + $0xe0] sm:$0xff] %v1183
    %1230 = vst [vmem:[#allocation5 + $0xe8] sm:$0xff] %v1188
    %1231 = vst [vmem:[#allocation5 + $0xf0] sm:$0xff] %v1193
    %1232 = vst [vmem:[#allocation5 + $0xf8] sm:$0xff] %v1198
    // Predicated region
    $region30: #{tpu_custom_call.1} parent=1 // pred_check
      _
    $region31: #{tpu_custom_call.1} parent=1 // pred_check_branch
      %1234 = sbr.rel (0) target = $region33
    $region32: #{tpu_custom_call.1} parent=1 // pred_region
      %s1236 = ssub.s32 4096, 4096
      %1237 = vsyncadd [#allocation4], %s1236
      %s1238 = sshll.u32 [#allocation5], 4
      %s1239 = int_to_ptr.vmem [resolvable:$true] %s1238
      %1244 = dma.vmem_to_hbm [thread:$0]  %s1239, 4096, %s6, [#allocation4], 128, 128, 8
    $region33: #{tpu_custom_call.1} parent=1 // pred_fallthru
      _
    // Predicated region
    $region34: #{tpu_custom_call.1} parent=1 // pred_check
      _
    $region35: #{tpu_custom_call.1} parent=1 // pred_check_branch
      %1246 = sbr.rel (0) target = $region37
    $region36: #{tpu_custom_call.1} parent=1 // pred_region
      %1247 = dma.done [#allocation4], 4096
    $region37: #{tpu_custom_call.1} parent=1 // pred_fallthru
      _
    %1248 = vsyncpa [#allocation3], 1
    %1249 = vsyncpa [#allocation4], 1

</llo_original>
